<compile_context>
chip_gen: v7x
topology: tpu7x:2x2x1
jax: 0.10.0
libtpu: 0.0.40
codegen_flags: <defaults>
</compile_context>

<pallas_src>
import math

import jax
import jax.numpy as jnp
from jax.experimental import pallas as pl
from jax.experimental.pallas import tpu as pltpu


def _policy_kernel(x_ref, w1_ref, w23_ref, whead_ref, bias_ref, z_ref,
                   out_ref, penalty_ref):
    A = whead_ref.shape[1] // 2          # n_action (static)

    x = x_ref[...]
    b1 = bias_ref[0:1, :]
    b2 = bias_ref[1:2, :]
    b3 = bias_ref[2:3, :]
    bh = bias_ref[3:4, 0:2 * A]

    # fc1 -> relu, fc2 -> relu, fc3 -> relu  (MXU matmuls, f32 accumulation)
    h1 = jnp.maximum(
        jnp.dot(x, w1_ref[...], preferred_element_type=jnp.float32) + b1, 0.0)
    h2 = jnp.maximum(
        jnp.dot(h1, w23_ref[0], preferred_element_type=jnp.float32) + b2, 0.0)
    h3 = jnp.maximum(
        jnp.dot(h2, w23_ref[1], preferred_element_type=jnp.float32) + b3, 0.0)

    # self.penalty = torch.norm(fc_output, p=2)  (Frobenius norm -> scalar)
    # Shaped keepdims reductions -> (1,1) VMEM output (no 0-d / SMEM crossing).
    sq = jnp.sum(h3 * h3, axis=1, keepdims=True)           # (B, 1)
    penalty_ref[...] = jnp.sqrt(jnp.sum(sq, axis=0, keepdims=True))

    # Fused mu/sigma heads: single MXU matmul, then static lane split.
    head = jnp.dot(h3, whead_ref[...], preferred_element_type=jnp.float32) + bh
    mu = jnp.tanh(head[:, 0:A])
    sigma = jax.nn.sigmoid(head[:, A:2 * A]) + 1e-6

    # action = clamp(mu + sigma * z, -1, 1)   (z is a single standard-normal sample)
    z = z_ref[0, 0]
    action = jnp.clip(mu + sigma * z, -1.0, 1.0)

    # log_prob = Normal(mu, sigma).log_prob(action[0])  (row 0 broadcast over batch,
    # matching the PyTorch code).
    a0 = action[0:1, :]
    var = sigma * sigma
    inv_2var = pl.reciprocal(2.0 * var, approx=True)        # EUP, off the VALU path
    log_prob = (-((a0 - mu) ** 2) * inv_2var
                - jnp.log(sigma)
                - 0.5 * math.log(2.0 * math.pi))

    # Single lane-dense output slab: mu | sigma | action | log_prob.
    out_ref[...] = jnp.concatenate([mu, sigma, action, log_prob], axis=1)


def _vmem_spec():
    return pl.BlockSpec(memory_space=pltpu.MemorySpace.VMEM)


def _smem_spec():
    return pl.BlockSpec(memory_space=pltpu.MemorySpace.SMEM)


def policy_forward(x, params, z):
    """Returns (mu, sigma, action, log_prob, penalty)."""
    B = x.shape[0]
    A = params["whead_t"].shape[1] // 2
    out, penalty = pl.pallas_call(
        _policy_kernel,
        out_shape=(
            jax.ShapeDtypeStruct((B, 4 * A), jnp.float32),   # mu|sigma|action|logprob
            jax.ShapeDtypeStruct((1, 1), jnp.float32),       # penalty (scalar)
        ),
        in_specs=[_vmem_spec()] * 5 + [_smem_spec()],
        out_specs=(_vmem_spec(), _vmem_spec()),
    )(x, params["w1_t"], params["w23_t"], params["whead_t"], params["bias"], z)

    mu = out[:, 0 * A:1 * A]
    sigma = out[:, 1 * A:2 * A]
    action = out[:, 2 * A:3 * A]
    log_prob = out[:, 3 * A:4 * A]
    return mu, sigma, action, log_prob, penalty[0, 0]


def init_params(key, n_feat, n_hidden, n_action):
    """Deterministic PyTorch-style init (uniform +-1/sqrt(fan_in)), packed for the kernel."""
    assert 2 * n_action <= n_hidden, "head bias packing assumes 2*A <= n_hidden"

    def linear(k, fan_in, fan_out):
        kw, kb = jax.random.split(k)
        bound = 1.0 / math.sqrt(fan_in)
        w = jax.random.uniform(kw, (fan_out, fan_in), jnp.float32, -bound, bound)
        b = jax.random.uniform(kb, (fan_out,), jnp.float32, -bound, bound)
        return w, b

    k1, k2, k3, k4, k5 = jax.random.split(key, 5)
    w1, b1 = linear(k1, n_feat, n_hidden)
    w2, b2 = linear(k2, n_hidden, n_hidden)
    w3, b3 = linear(k3, n_hidden, n_hidden)
    wmu, bmu = linear(k4, n_hidden, n_action)
    wsg, bsg = linear(k5, n_hidden, n_action)

    # NormedLinear(scale=0.1): rows normalized to unit L2 norm, scaled by 0.1.
    scale = 0.1
    wmu = wmu * (scale / jnp.linalg.norm(wmu, axis=1, keepdims=True))
    wsg = wsg * (scale / jnp.linalg.norm(wsg, axis=1, keepdims=True))

    # Packed / pre-transposed buffers (x @ W layout):
    w1_t = jnp.transpose(w1)                                        # (F, H)
    w23_t = jnp.stack([jnp.transpose(w2), jnp.transpose(w3)])       # (2, H, H)
    whead_t = jnp.concatenate(
        [jnp.transpose(wmu), jnp.transpose(wsg)], axis=1)           # (H, 2A)

    bias = jnp.zeros((4, n_hidden), jnp.float32)
    bias = bias.at[0].set(b1).at[1].set(b2).at[2].set(b3)
    bias = bias.at[3, :2 * n_action].set(jnp.concatenate([bmu, bsg]))

    return dict(w1_t=w1_t, w23_t=w23_t, whead_t=whead_t, bias=bias)


if __name__ == "__main__":
    # args: n_rnn_hidden=16, n_rnn_layers=2, rnn_directions=1, n_action=4
    n_feat = 16 * 2 * 1          # feature_extractor = 32
    n_hidden = n_feat * 2        # last_hidden = 64
    n_action = 4
    batch = 2

    key = jax.random.PRNGKey(0)
    kx, kz, kp = jax.random.split(key, 3)

    x = jax.random.normal(kx, (batch, n_feat), jnp.float32)
    z = jax.random.normal(kz, (1, 1), jnp.float32)   # Normal(0,1).sample()
    params = init_params(kp, n_feat, n_hidden, n_action)

    mu, sigma, action, log_prob, penalty = jax.block_until_ready(
        policy_forward(x, params, z))

    assert mu.shape == (batch, n_action)
    assert sigma.shape == (batch, n_action)
    assert action.shape == (batch, n_action)
    assert log_prob.shape == (batch, n_action)
    assert penalty.shape == ()
    assert bool(jnp.all(jnp.isfinite(mu)))
    assert bool(jnp.all(sigma > 0))
    assert bool(jnp.all(jnp.abs(action) <= 1.0))
    print("KERNEL_OK")
</pallas_src>

<mosaic_0001>
module attributes {stable_mosaic.version = 11 : i64} {
  func.func @_policy_kernel(%arg0: memref<2x32xf32, #tpu.memory_space<vmem>>, %arg1: memref<32x64xf32, #tpu.memory_space<vmem>>, %arg2: memref<2x64x64xf32, #tpu.memory_space<vmem>>, %arg3: memref<64x8xf32, #tpu.memory_space<vmem>>, %arg4: memref<4x64xf32, #tpu.memory_space<vmem>>, %arg5: memref<1x1xf32, #tpu.memory_space<smem>>, %arg6: memref<2x16xf32, #tpu.memory_space<vmem>>, %arg7: memref<1x1xf32, #tpu.memory_space<vmem>>) attributes {dimension_semantics = [], scalar_prefetch = 0 : i64, scratch_operands = 0 : i64, tpu.core_type = #tpu.core_type<tc>} {
    %c0 = arith.constant 0 : index
    %c0_0 = arith.constant 0 : index
    %0 = vector.load %arg0[%c0, %c0_0] : memref<2x32xf32, #tpu.memory_space<vmem>>, vector<2x32xf32>
    %c0_1 = arith.constant 0 : index
    %c0_2 = arith.constant 0 : index
    %1 = vector.load %arg4[%c0_1, %c0_2] : memref<4x64xf32, #tpu.memory_space<vmem>>, vector<1x64xf32>
    %c1 = arith.constant 1 : index
    %c0_3 = arith.constant 0 : index
    %2 = vector.load %arg4[%c1, %c0_3] : memref<4x64xf32, #tpu.memory_space<vmem>>, vector<1x64xf32>
    %c2 = arith.constant 2 : index
    %c0_4 = arith.constant 0 : index
    %3 = vector.load %arg4[%c2, %c0_4] : memref<4x64xf32, #tpu.memory_space<vmem>>, vector<1x64xf32>
    %c3 = arith.constant 3 : index
    %c0_5 = arith.constant 0 : index
    %4 = vector.load %arg4[%c3, %c0_5] : memref<4x64xf32, #tpu.memory_space<vmem>>, vector<1x8xf32>
    %c0_6 = arith.constant 0 : index
    %c0_7 = arith.constant 0 : index
    %5 = vector.load %arg1[%c0_6, %c0_7] : memref<32x64xf32, #tpu.memory_space<vmem>>, vector<32x64xf32>
    %cst = arith.constant dense<0.000000e+00> : vector<2x64xf32>
    %6 = tpu.matmul %0, %5, %cst {dimension_numbers = #tpu.dot_dimension_numbers<[1], [0], [0], [1], [0, 0, 1, 1], [], []>} : vector<2x32xf32>, vector<32x64xf32>, vector<2x64xf32> -> vector<2x64xf32>
    %7 = vector.broadcast %1 : vector<1x64xf32> to vector<2x64xf32>
    %8 = arith.addf %6, %7 : vector<2x64xf32>
    %cst_8 = arith.constant 0.000000e+00 : f32
    %9 = vector.broadcast %cst_8 : f32 to vector<2x64xf32>
    %10 = arith.maximumf %8, %9 : vector<2x64xf32>
    %c0_9 = arith.constant 0 : index
    %c0_10 = arith.constant 0 : index
    %c0_11 = arith.constant 0 : index
    %11 = vector.load %arg2[%c0_9, %c0_10, %c0_11] : memref<2x64x64xf32, #tpu.memory_space<vmem>>, vector<1x64x64xf32>
    %12 = vector.shape_cast %11 : vector<1x64x64xf32> to vector<64x64xf32>
    %cst_12 = arith.constant dense<0.000000e+00> : vector<2x64xf32>
    %13 = tpu.matmul %10, %12, %cst_12 {dimension_numbers = #tpu.dot_dimension_numbers<[1], [0], [0], [1], [0, 0, 1, 1], [], []>} : vector<2x64xf32>, vector<64x64xf32>, vector<2x64xf32> -> vector<2x64xf32>
    %14 = vector.broadcast %2 : vector<1x64xf32> to vector<2x64xf32>
    %15 = arith.addf %13, %14 : vector<2x64xf32>
    %cst_13 = arith.constant 0.000000e+00 : f32
    %16 = vector.broadcast %cst_13 : f32 to vector<2x64xf32>
    %17 = arith.maximumf %15, %16 : vector<2x64xf32>
    %c1_14 = arith.constant 1 : index
    %c0_15 = arith.constant 0 : index
    %c0_16 = arith.constant 0 : index
    %18 = vector.load %arg2[%c1_14, %c0_15, %c0_16] : memref<2x64x64xf32, #tpu.memory_space<vmem>>, vector<1x64x64xf32>
    %19 = vector.shape_cast %18 : vector<1x64x64xf32> to vector<64x64xf32>
    %cst_17 = arith.constant dense<0.000000e+00> : vector<2x64xf32>
    %20 = tpu.matmul %17, %19, %cst_17 {dimension_numbers = #tpu.dot_dimension_numbers<[1], [0], [0], [1], [0, 0, 1, 1], [], []>} : vector<2x64xf32>, vector<64x64xf32>, vector<2x64xf32> -> vector<2x64xf32>
    %21 = vector.broadcast %3 : vector<1x64xf32> to vector<2x64xf32>
    %22 = arith.addf %20, %21 : vector<2x64xf32>
    %cst_18 = arith.constant 0.000000e+00 : f32
    %23 = vector.broadcast %cst_18 : f32 to vector<2x64xf32>
    %24 = arith.maximumf %22, %23 : vector<2x64xf32>
    %25 = arith.mulf %24, %24 : vector<2x64xf32>
    %cst_19 = arith.constant dense<0.000000e+00> : vector<2xf32>
    %26 = vector.multi_reduction <add>, %25, %cst_19 [1] : vector<2x64xf32> to vector<2xf32>
    %27 = vector.shape_cast %26 : vector<2xf32> to vector<2x1xf32>
    %cst_20 = arith.constant dense<0.000000e+00> : vector<1xf32>
    %28 = vector.multi_reduction <add>, %27, %cst_20 [0] : vector<2x1xf32> to vector<1xf32>
    %29 = vector.shape_cast %28 : vector<1xf32> to vector<1x1xf32>
    %30 = math.sqrt %29 : vector<1x1xf32>
    %c0_21 = arith.constant 0 : index
    %c0_22 = arith.constant 0 : index
    %31 = vector.load %arg7[%c0_21, %c0_22] : memref<1x1xf32, #tpu.memory_space<vmem>>, vector<1x1xf32>
    tpu.vector_store %arg7[%c0_21, %c0_22], %30 {strides = array<i32>} : memref<1x1xf32, #tpu.memory_space<vmem>>, vector<1x1xf32>,
    %c0_23 = arith.constant 0 : index
    %c0_24 = arith.constant 0 : index
    %32 = vector.load %arg3[%c0_23, %c0_24] : memref<64x8xf32, #tpu.memory_space<vmem>>, vector<64x8xf32>
    %cst_25 = arith.constant dense<0.000000e+00> : vector<2x8xf32>
    %33 = tpu.matmul %24, %32, %cst_25 {dimension_numbers = #tpu.dot_dimension_numbers<[1], [0], [0], [1], [0, 0, 1, 1], [], []>} : vector<2x64xf32>, vector<64x8xf32>, vector<2x8xf32> -> vector<2x8xf32>
    %34 = vector.broadcast %4 : vector<1x8xf32> to vector<2x8xf32>
    %35 = arith.addf %33, %34 : vector<2x8xf32>
    %36 = vector.extract_strided_slice %35 {offsets = [0, 0], sizes = [2, 4], strides = [1, 1]} : vector<2x8xf32> to vector<2x4xf32>
    %37 = math.tanh %36 : vector<2x4xf32>
    %38 = vector.extract_strided_slice %35 {offsets = [0, 4], sizes = [2, 4], strides = [1, 1]} : vector<2x8xf32> to vector<2x4xf32>
    %39 = arith.negf %38 : vector<2x4xf32>
    %40 = math.exp %39 : vector<2x4xf32>
    %cst_26 = arith.constant 1.000000e+00 : f32
    %41 = vector.broadcast %cst_26 : f32 to vector<2x4xf32>
    %42 = arith.addf %41, %40 : vector<2x4xf32>
    %43 = arith.divf %41, %42 : vector<2x4xf32>
    %cst_27 = arith.constant 9.99999997E-7 : f32
    %44 = vector.broadcast %cst_27 : f32 to vector<2x4xf32>
    %45 = arith.addf %43, %44 : vector<2x4xf32>
    %c0_28 = arith.constant 0 : index
    %c0_29 = arith.constant 0 : index
    %46 = memref.load %arg5[%c0_28, %c0_29] : memref<1x1xf32, #tpu.memory_space<smem>>
    %47 = vector.broadcast %46 : f32 to vector<2x4xf32>
    %48 = arith.mulf %45, %47 : vector<2x4xf32>
    %49 = arith.addf %37, %48 : vector<2x4xf32>
    %cst_30 = arith.constant -1.000000e+00 : f32
    %cst_31 = arith.constant 1.000000e+00 : f32
    %50 = vector.broadcast %cst_30 : f32 to vector<2x4xf32>
    %51 = arith.maximumf %50, %49 : vector<2x4xf32>
    %52 = vector.broadcast %cst_31 : f32 to vector<2x4xf32>
    %53 = arith.minimumf %52, %51 : vector<2x4xf32>
    %54 = vector.extract_strided_slice %53 {offsets = [0, 0], sizes = [1, 4], strides = [1, 1]} : vector<2x4xf32> to vector<1x4xf32>
    %55 = arith.mulf %45, %45 : vector<2x4xf32>
    %cst_32 = arith.constant 2.000000e+00 : f32
    %56 = vector.broadcast %cst_32 : f32 to vector<2x4xf32>
    %57 = arith.mulf %56, %55 : vector<2x4xf32>
    %58 = tpu.reciprocal %57 {approx = true} : vector<2x4xf32> -> vector<2x4xf32>
    %59 = vector.broadcast %54 : vector<1x4xf32> to vector<2x4xf32>
    %60 = arith.subf %59, %37 : vector<2x4xf32>
    %61 = arith.mulf %60, %60 : vector<2x4xf32>
    %cst_33 = arith.constant 0.000000e+00 : f32
    %62 = vector.broadcast %cst_33 : f32 to vector<2x4xf32>
    %63 = arith.subf %62, %61 : vector<2x4xf32>
    %64 = arith.mulf %63, %58 : vector<2x4xf32>
    %65 = math.log %45 : vector<2x4xf32>
    %66 = arith.subf %64, %65 : vector<2x4xf32>
    %cst_34 = arith.constant 0.918938517 : f32
    %67 = vector.broadcast %cst_34 : f32 to vector<2x4xf32>
    %68 = arith.subf %66, %67 : vector<2x4xf32>
    %69 = tpu.concatenate %37, %45, %53, %68 in 1 : vector<2x4xf32>, vector<2x4xf32>, vector<2x4xf32>, vector<2x4xf32> -> vector<2x16xf32>
    %c0_35 = arith.constant 0 : index
    %c0_36 = arith.constant 0 : index
    %70 = vector.load %arg6[%c0_35, %c0_36] : memref<2x16xf32, #tpu.memory_space<vmem>>, vector<2x16xf32>
    tpu.vector_store %arg6[%c0_35, %c0_36], %69 {strides = array<i32>} : memref<2x16xf32, #tpu.memory_space<vmem>>, vector<2x16xf32>,
    return
  }
}

</mosaic_0001>

<llo_original>
// kernel: tpu_custom_call.1
$region0: #{tpu_custom_call.1}
  #allocation0 [shape = 'u32[]', space=smem, size = 0x4, offset = 0x4, fixed_abs, tag = 'smem constant byte address 0x4 - core index']
  #allocation1 [shape = 'u32[144,128]{1,0:T(1,128)}', space=vmem, size = 0x12000, scoped, tag = 'internal scratch']
  #allocation2 [shape = 'f32[1,1]{1,0:T(1,128)S(6)}', space=smem, size = 0x200, scoped, tag = 'scoped memory for tpu_custom_call.1']
  %s0 = inlined_call_operand.vmem [shape: f32[2,32], index: 0, kind: input, shape index: {}]
  %s1 = inlined_call_operand.vmem [shape: f32[32,64], index: 1, kind: input, shape index: {}]
  %s2 = inlined_call_operand.hbm [shape: f32[2,64,64], index: 2, kind: input, shape index: {}]
  %s3 = inlined_call_operand.vmem [shape: f32[64,8], index: 3, kind: input, shape index: {}]
  %s4 = inlined_call_operand.vmem [shape: f32[4,64], index: 4, kind: input, shape index: {}]
  %s5 = inlined_call_operand.<no memory space> [shape: f32[1,1], index: 5, kind: input, shape index: {}]
  %s6 = inlined_call_operand.hbm [shape: f32[2,16], index: 6, kind: output, shape index: {0}]
  %s7 = inlined_call_operand.hbm [shape: f32[1,1], index: 7, kind: output, shape index: {1}]
  %8 = xla_tuple %s6, %s7
  %s9 = sld [smem:[#allocation0]]
  $region46: #{tpu_custom_call.1} parent=0
    _
  %s11 = ssub.s32 1, %s9
  %s12 = scalar_select 0, %s11, %s9
  %13 = sst [smem:[#allocation2]] %s5
  $region1: #{tpu_custom_call.1} parent=0
    #allocation3 [shape = 'u8[65536]{0}', space=vmem, size = 0x10000, scoped, tag = 'input window, operand 2, single buffered']
    #allocation4 [shape = 's32[1]{0}', space=sflag, size = 0x4, scoped, tag = 'scoped memory for tpu_custom_call.1']
    #allocation5 [shape = 's32[1]{0}', space=sflag, size = 0x4, scoped, tag = 'scoped memory for tpu_custom_call.1']
    #allocation6 [shape = 'u8[1024]{0}', space=vmem, size = 0x400, scoped, tag = 'output window, operand 0, single buffered']
    #allocation7 [shape = 'u8[512]{0}', space=vmem, size = 0x400, scoped, tag = 'output window, operand 1, single buffered']
    #allocation8 [shape = 's32[1]{0}', space=sflag, size = 0x4, scoped, tag = 'scoped memory for tpu_custom_call.1']
    %14 = vsyncpa [#allocation4], 0
    %15 = vsyncpa [#allocation5], 0
    %16 = vsyncpa [#allocation8], 0
    // Predicated region
    $region2: #{tpu_custom_call.1} parent=1 // pred_check
      _
    $region3: #{tpu_custom_call.1} parent=1 // pred_check_branch
      %18 = sbr.rel (0) target = $region5
    $region4: #{tpu_custom_call.1} parent=1 // pred_region
      _
    $region5: #{tpu_custom_call.1} parent=1 // pred_fallthru
      _
    // Predicated region
    $region6: #{tpu_custom_call.1} parent=1 // pred_check
      _
    $region7: #{tpu_custom_call.1} parent=1 // pred_check_branch
      %20 = sbr.rel (0) target = $region9
    $region8: #{tpu_custom_call.1} parent=1 // pred_region
      _
    $region9: #{tpu_custom_call.1} parent=1 // pred_fallthru
      _
    // Predicated region
    $region10: #{tpu_custom_call.1} parent=1 // pred_check
      _
    $region11: #{tpu_custom_call.1} parent=1 // pred_check_branch
      %22 = sbr.rel (0) target = $region13
    $region12: #{tpu_custom_call.1} parent=1 // pred_region
      %s24 = ssub.s32 2048, 2048
      %25 = vsyncadd [#allocation4], %s24
      %s26 = sshll.u32 [#allocation3], 4
      %s27 = int_to_ptr.vmem [resolvable:$true] %s26
      %32 = dma.hbm_to_vmem [thread:$0]  %s2, 2048, %s27, [#allocation4], 128, 128, 8
    $region13: #{tpu_custom_call.1} parent=1 // pred_fallthru
      _
    // Predicated region
    $region14: #{tpu_custom_call.1} parent=1 // pred_check
      _
    $region15: #{tpu_custom_call.1} parent=1 // pred_check_branch
      %34 = sbr.rel (0) target = $region17
    $region16: #{tpu_custom_call.1} parent=1 // pred_region
      _
    $region17: #{tpu_custom_call.1} parent=1 // pred_fallthru
      _
    // Predicated region
    $region18: #{tpu_custom_call.1} parent=1 // pred_check
      _
    $region19: #{tpu_custom_call.1} parent=1 // pred_check_branch
      %36 = sbr.rel (0) target = $region21
    $region20: #{tpu_custom_call.1} parent=1 // pred_region
      _
    $region21: #{tpu_custom_call.1} parent=1 // pred_fallthru
      _
    // Predicated region
    $region22: #{tpu_custom_call.1} parent=1 // pred_check
      _
    $region23: #{tpu_custom_call.1} parent=1 // pred_check_branch
      %38 = sbr.rel (0) target = $region25
    $region24: #{tpu_custom_call.1} parent=1 // pred_region
      _
    $region25: #{tpu_custom_call.1} parent=1 // pred_fallthru
      _
    // Predicated region
    $region26: #{tpu_custom_call.1} parent=1 // pred_check
      _
    $region27: #{tpu_custom_call.1} parent=1 // pred_check_branch
      %40 = sbr.rel (0) target = $region29
    $region28: #{tpu_custom_call.1} parent=1 // pred_region
      %41 = dma.done [#allocation4], 2048
    $region29: #{tpu_custom_call.1} parent=1 // pred_fallthru
      _
    %v42 = vld [vmem:[%s0] sm:$0x3]
    %v43 = vld [vmem:[%s4] sm:$0x1]
    %v44 = vld [vmem:[%s4 + $0x1] sm:$0x1]
    %v45 = vld [vmem:[%s4 + $0x2] sm:$0x1]
    %v46 = vld [vmem:[%s4 + $0x3] sm:$0x1]
    %v47 = vld [vmem:[%s1] sm:$0xff]
    %v48 = vld [vmem:[%s1 + $0x8] sm:$0xff]
    %v49 = vld [vmem:[%s1 + $0x10] sm:$0xff]
    %v50 = vld [vmem:[%s1 + $0x18] sm:$0xff]
    %v51 = vlaneseq
    %v52 = vshrl.u32 %v51, 7
    %v53 = vsub.s32 0, %v52
    %v54 = vrot.slane %v43, %v53
    %vm55 = vcmask 261120
    %v57 = vsel %vm55, %v42, 0
    %59 = vmatprep.subr.mxu0 0.0
    %60 = vmatpush1.msra.mxu0 %v47
    %61 = vmatprep.subr.mxu0 0.0
    %62 = vmatpush1.msra.mxu0 %v48
    %63 = vmatprep.subr.mxu0 0.0
    %64 = vmatpush1.msra.mxu0 %v49
    %65 = vmatprep.subr.mxu0 0.0
    %66 = vmatpush1.msra.mxu0 %v50
    %67 = vmatprep.subr.mxu0 0.0
    %68 = vmatpush1.msra.mxu0 0.0
    %69 = vmatprep.subr.mxu0 0.0
    %70 = vmatpush1.msra.mxu0 0.0
    %71 = vmatprep.subr.mxu0 0.0
    %72 = vmatpush1.msra.mxu0 0.0
    %73 = vmatprep.subr.mxu0 0.0
    %74 = vmatpush1.msra.mxu0 0.0
    %75 = vmatprep.subr.mxu0 0.0
    %76 = vmatpush1.msra.mxu0 0.0
    %77 = vmatprep.subr.mxu0 0.0
    %78 = vmatpush1.msra.mxu0 0.0
    %79 = vmatprep.subr.mxu0 0.0
    %80 = vmatpush1.msra.mxu0 0.0
    %81 = vmatprep.subr.mxu0 0.0
    %82 = vmatpush1.msra.mxu0 0.0
    %83 = vmatprep.subr.mxu0 0.0
    %84 = vmatpush1.msra.mxu0 0.0
    %85 = vmatprep.subr.mxu0 0.0
    %86 = vmatpush1.msra.mxu0 0.0
    %87 = vmatprep.subr.mxu0 0.0
    %88 = vmatpush1.msra.mxu0 0.0
    %89 = vmatprep.subr.mxu0 0.0
    %90 = vmatpush1.msra.mxu0 0.0
    %91 = vmatprep.subr.mxu0 0.0
    %92 = vmatpush1.msra.mxu0 0.0
    %93 = vmatprep.subr.mxu0 0.0
    %94 = vmatpush1.msra.mxu0 0.0
    %95 = vmatprep.subr.mxu0 0.0
    %96 = vmatpush1.msra.mxu0 0.0
    %97 = vmatprep.subr.mxu0 0.0
    %98 = vmatpush1.msra.mxu0 0.0
    %99 = vmatprep.subr.mxu0 0.0
    %100 = vmatpush1.msra.mxu0 0.0
    %101 = vmatprep.subr.mxu0 0.0
    %102 = vmatpush1.msra.mxu0 0.0
    %103 = vmatprep.subr.mxu0 0.0
    %104 = vmatpush1.msra.mxu0 0.0
    %105 = vmatprep.subr.mxu0 0.0
    %106 = vmatpush1.msra.mxu0 0.0
    %107 = vmatprep.subr.mxu0 0.0
    %108 = vmatpush1.msra.mxu0 0.0
    %109 = vmatprep.subr.mxu0 0.0
    %110 = vmatpush1.msra.mxu0 0.0
    %111 = vmatprep.subr.mxu0 0.0
    %112 = vmatpush1.msra.mxu0 0.0
    %113 = vmatprep.subr.mxu0 0.0
    %114 = vmatpush1.msra.mxu0 0.0
    %115 = vmatprep.subr.mxu0 0.0
    %116 = vmatpush1.msra.mxu0 0.0
    %117 = vmatprep.subr.mxu0 0.0
    %118 = vmatpush1.msra.mxu0 0.0
    %119 = vmatprep.subr.mxu0 0.0
    %120 = vmatpush1.msra.mxu0 0.0
    %121 = vmatprep.subr.mxu0 0.0
    %122 = vmatpush1.msra.mxu0 0.0
    %123 = vmatprep.mubr.f32.mxu0 0.0
    %124 = vmatmul.mubr.f32.gmra.mrb[0].mxu0 %v57
    %v125 = vpop.f32.mrb[0].mxu0
    %v126 = vadd.f32 %v54, %v125
    %v127 = vpop.f32.mrb[0].mxu0
    %128 = vdwg.mxu0
    %v129 = vmax.f32 %v126, 0.0
    %v130 = vld [vmem:[#allocation3] sm:$0xff]
    %v131 = vld [vmem:[#allocation3 + $0x8] sm:$0xff]
    %v132 = vld [vmem:[#allocation3 + $0x10] sm:$0xff]
    %v133 = vld [vmem:[#allocation3 + $0x18] sm:$0xff]
    %v134 = vld [vmem:[#allocation3 + $0x20] sm:$0xff]
    %v135 = vld [vmem:[#allocation3 + $0x28] sm:$0xff]
    %v136 = vld [vmem:[#allocation3 + $0x30] sm:$0xff]
    %v137 = vld [vmem:[#allocation3 + $0x38] sm:$0xff]
    %v138 = vlaneseq
    %v139 = vshrl.u32 %v138, 7
    %v140 = vsub.s32 0, %v139
    %v141 = vrot.slane %v44, %v140
    %vm142 = vcmask 523264
    %v144 = vsel %vm142, %v129, 0
    %146 = vmatprep.subr.mxu0 0.0
    %147 = vmatpush1.msra.mxu0 %v130
    %148 = vmatprep.subr.mxu0 0.0
    %149 = vmatpush1.msra.mxu0 %v131
    %150 = vmatprep.subr.mxu0 0.0
    %151 = vmatpush1.msra.mxu0 %v132
    %152 = vmatprep.subr.mxu0 0.0
    %153 = vmatpush1.msra.mxu0 %v133
    %154 = vmatprep.subr.mxu0 0.0
    %155 = vmatpush1.msra.mxu0 %v134
    %156 = vmatprep.subr.mxu0 0.0
    %157 = vmatpush1.msra.mxu0 %v135
    %158 = vmatprep.subr.mxu0 0.0
    %159 = vmatpush1.msra.mxu0 %v136
    %160 = vmatprep.subr.mxu0 0.0
    %161 = vmatpush1.msra.mxu0 %v137
    %162 = vmatprep.subr.mxu0 0.0
    %163 = vmatpush1.msra.mxu0 0.0
    %164 = vmatprep.subr.mxu0 0.0
    %165 = vmatpush1.msra.mxu0 0.0
    %166 = vmatprep.subr.mxu0 0.0
    %167 = vmatpush1.msra.mxu0 0.0
    %168 = vmatprep.subr.mxu0 0.0
    %169 = vmatpush1.msra.mxu0 0.0
    %170 = vmatprep.subr.mxu0 0.0
    %171 = vmatpush1.msra.mxu0 0.0
    %172 = vmatprep.subr.mxu0 0.0
    %173 = vmatpush1.msra.mxu0 0.0
    %174 = vmatprep.subr.mxu0 0.0
    %175 = vmatpush1.msra.mxu0 0.0
    %176 = vmatprep.subr.mxu0 0.0
    %177 = vmatpush1.msra.mxu0 0.0
    %178 = vmatprep.subr.mxu0 0.0
    %179 = vmatpush1.msra.mxu0 0.0
    %180 = vmatprep.subr.mxu0 0.0
    %181 = vmatpush1.msra.mxu0 0.0
    %182 = vmatprep.subr.mxu0 0.0
    %183 = vmatpush1.msra.mxu0 0.0
    %184 = vmatprep.subr.mxu0 0.0
    %185 = vmatpush1.msra.mxu0 0.0
    %186 = vmatprep.subr.mxu0 0.0
    %187 = vmatpush1.msra.mxu0 0.0
    %188 = vmatprep.subr.mxu0 0.0
    %189 = vmatpush1.msra.mxu0 0.0
    %190 = vmatprep.subr.mxu0 0.0
    %191 = vmatpush1.msra.mxu0 0.0
    %192 = vmatprep.subr.mxu0 0.0
    %193 = vmatpush1.msra.mxu0 0.0
    %194 = vmatprep.subr.mxu0 0.0
    %195 = vmatpush1.msra.mxu0 0.0
    %196 = vmatprep.subr.mxu0 0.0
    %197 = vmatpush1.msra.mxu0 0.0
    %198 = vmatprep.subr.mxu0 0.0
    %199 = vmatpush1.msra.mxu0 0.0
    %200 = vmatprep.subr.mxu0 0.0
    %201 = vmatpush1.msra.mxu0 0.0
    %202 = vmatprep.subr.mxu0 0.0
    %203 = vmatpush1.msra.mxu0 0.0
    %204 = vmatprep.subr.mxu0 0.0
    %205 = vmatpush1.msra.mxu0 0.0
    %206 = vmatprep.subr.mxu0 0.0
    %207 = vmatpush1.msra.mxu0 0.0
    %208 = vmatprep.subr.mxu0 0.0
    %209 = vmatpush1.msra.mxu0 0.0
    %210 = vmatprep.mubr.f32.mxu0 0.0
    %211 = vmatmul.mubr.f32.gmra.mrb[0].mxu0 %v144
    %v212 = vpop.f32.mrb[0].mxu0
    %v213 = vadd.f32 %v141, %v212
    %v214 = vpop.f32.mrb[0].mxu0
    %215 = vdwg.mxu0
    %v216 = vmax.f32 %v213, 0.0
    %s217 = scalar_lea.vmem [#allocation3], 64
    %v218 = vld [vmem:[%s217] sm:$0xff]
    %v219 = vld [vmem:[%s217 + $0x8] sm:$0xff]
    %v220 = vld [vmem:[%s217 + $0x10] sm:$0xff]
    %v221 = vld [vmem:[%s217 + $0x18] sm:$0xff]
    %v222 = vld [vmem:[%s217 + $0x20] sm:$0xff]
    %v223 = vld [vmem:[%s217 + $0x28] sm:$0xff]
    %v224 = vld [vmem:[%s217 + $0x30] sm:$0xff]
    %v225 = vld [vmem:[%s217 + $0x38] sm:$0xff]
    %v226 = vlaneseq
    %v227 = vshrl.u32 %v226, 7
    %v228 = vsub.s32 0, %v227
    %v229 = vrot.slane %v45, %v228
    %v231 = vsel %vm142, %v216, 0
    %233 = vmatprep.subr.mxu0 0.0
    %234 = vmatpush1.msra.mxu0 %v218
    %235 = vmatprep.subr.mxu0 0.0
    %236 = vmatpush1.msra.mxu0 %v219
    %237 = vmatprep.subr.mxu0 0.0
    %238 = vmatpush1.msra.mxu0 %v220
    %239 = vmatprep.subr.mxu0 0.0
    %240 = vmatpush1.msra.mxu0 %v221
    %241 = vmatprep.subr.mxu0 0.0
    %242 = vmatpush1.msra.mxu0 %v222
    %243 = vmatprep.subr.mxu0 0.0
    %244 = vmatpush1.msra.mxu0 %v223
    %245 = vmatprep.subr.mxu0 0.0
    %246 = vmatpush1.msra.mxu0 %v224
    %247 = vmatprep.subr.mxu0 0.0
    %248 = vmatpush1.msra.mxu0 %v225
    %249 = vmatprep.subr.mxu0 0.0
    %250 = vmatpush1.msra.mxu0 0.0
    %251 = vmatprep.subr.mxu0 0.0
    %252 = vmatpush1.msra.mxu0 0.0
    %253 = vmatprep.subr.mxu0 0.0
    %254 = vmatpush1.msra.mxu0 0.0
    %255 = vmatprep.subr.mxu0 0.0
    %256 = vmatpush1.msra.mxu0 0.0
    %257 = vmatprep.subr.mxu0 0.0
    %258 = vmatpush1.msra.mxu0 0.0
    %259 = vmatprep.subr.mxu0 0.0
    %260 = vmatpush1.msra.mxu0 0.0
    %261 = vmatprep.subr.mxu0 0.0
    %262 = vmatpush1.msra.mxu0 0.0
    %263 = vmatprep.subr.mxu0 0.0
    %264 = vmatpush1.msra.mxu0 0.0
    %265 = vmatprep.subr.mxu0 0.0
    %266 = vmatpush1.msra.mxu0 0.0
    %267 = vmatprep.subr.mxu0 0.0
    %268 = vmatpush1.msra.mxu0 0.0
    %269 = vmatprep.subr.mxu0 0.0
    %270 = vmatpush1.msra.mxu0 0.0
    %271 = vmatprep.subr.mxu0 0.0
    %272 = vmatpush1.msra.mxu0 0.0
    %273 = vmatprep.subr.mxu0 0.0
    %274 = vmatpush1.msra.mxu0 0.0
    %275 = vmatprep.subr.mxu0 0.0
    %276 = vmatpush1.msra.mxu0 0.0
    %277 = vmatprep.subr.mxu0 0.0
    %278 = vmatpush1.msra.mxu0 0.0
    %279 = vmatprep.subr.mxu0 0.0
    %280 = vmatpush1.msra.mxu0 0.0
    %281 = vmatprep.subr.mxu0 0.0
    %282 = vmatpush1.msra.mxu0 0.0
    %283 = vmatprep.subr.mxu0 0.0
    %284 = vmatpush1.msra.mxu0 0.0
    %285 = vmatprep.subr.mxu0 0.0
    %286 = vmatpush1.msra.mxu0 0.0
    %287 = vmatprep.subr.mxu0 0.0
    %288 = vmatpush1.msra.mxu0 0.0
    %289 = vmatprep.subr.mxu0 0.0
    %290 = vmatpush1.msra.mxu0 0.0
    %291 = vmatprep.subr.mxu0 0.0
    %292 = vmatpush1.msra.mxu0 0.0
    %293 = vmatprep.subr.mxu0 0.0
    %294 = vmatpush1.msra.mxu0 0.0
    %295 = vmatprep.subr.mxu0 0.0
    %296 = vmatpush1.msra.mxu0 0.0
    %297 = vmatprep.mubr.f32.mxu0 0.0
    %298 = vmatmul.mubr.f32.gmra.mrb[0].mxu0 %v231
    %v299 = vpop.f32.mrb[0].mxu0
    %v300 = vadd.f32 %v229, %v299
    %v301 = vpop.f32.mrb[0].mxu0
    %302 = vdwg.mxu0
    %v303 = vmax.f32 %v300, 0.0
    %v304 = vmul.f32 %v303, %v303
    %vm305 = vcmask 517120
    %v306 = vsel %vm305, %v304, 0.0
    %307 = vadd.xlane.f32.xlu0 %v306
    %v308 = vpop.xlane.xlu0 %307
    %vm309 = vcmask 1041408
    %v310 = vsel %vm309, %v308, 0.0
    %v311 = vrot.slane %v310, 4
    %v312 = vadd.f32 %v310, %v311
    %v313 = vrot.slane %v312, 2
    %v314 = vadd.f32 %v312, %v313
    %v315 = vrot.slane %v314, 1
    %v316 = vadd.f32 %v314, %v315
    %v317 = vrsqrt.pop %v316
    %v318 = vmul.f32 %v316, %v317
    %vm319 = vcmp.eq.f32.partialorder %v316, inf
    %v320 = vsel %vm319, %v316, %v318
    %vm321 = vcmp.eq.f32.partialorder %v316, 0.0
    %v322 = vand.u32 %v316, 2147483648
    %v323 = vsel %vm321, %v322, %v320
    %vm324 = vcmask 0
    %325 = vst.msk [vmem:[#allocation7] sm:$0x1] %vm324, %v323
    %v326 = vld [vmem:[%s3] sm:$0xff]
    %v327 = vld [vmem:[%s3 + $0x8] sm:$0xff]
    %v328 = vld [vmem:[%s3 + $0x10] sm:$0xff]
    %v329 = vld [vmem:[%s3 + $0x18] sm:$0xff]
    %v330 = vld [vmem:[%s3 + $0x20] sm:$0xff]
    %v331 = vld [vmem:[%s3 + $0x28] sm:$0xff]
    %v332 = vld [vmem:[%s3 + $0x30] sm:$0xff]
    %v333 = vld [vmem:[%s3 + $0x38] sm:$0xff]
    %v334 = vlaneseq
    %v335 = vshrl.u32 %v334, 7
    %v336 = vsub.s32 0, %v335
    %v337 = vrot.slane %v46, %v336
    %v339 = vsel %vm142, %v303, 0
    %341 = vmatprep.subr.mxu0 0.0
    %342 = vmatpush1.msra.mxu0 %v326
    %343 = vmatprep.subr.mxu0 0.0
    %344 = vmatpush1.msra.mxu0 %v327
    %345 = vmatprep.subr.mxu0 0.0
    %346 = vmatpush1.msra.mxu0 %v328
    %347 = vmatprep.subr.mxu0 0.0
    %348 = vmatpush1.msra.mxu0 %v329
    %349 = vmatprep.subr.mxu0 0.0
    %350 = vmatpush1.msra.mxu0 %v330
    %351 = vmatprep.subr.mxu0 0.0
    %352 = vmatpush1.msra.mxu0 %v331
    %353 = vmatprep.subr.mxu0 0.0
    %354 = vmatpush1.msra.mxu0 %v332
    %355 = vmatprep.subr.mxu0 0.0
    %356 = vmatpush1.msra.mxu0 %v333
    %357 = vmatprep.subr.mxu0 0.0
    %358 = vmatpush1.msra.mxu0 0.0
    %359 = vmatprep.subr.mxu0 0.0
    %360 = vmatpush1.msra.mxu0 0.0
    %361 = vmatprep.subr.mxu0 0.0
    %362 = vmatpush1.msra.mxu0 0.0
    %363 = vmatprep.subr.mxu0 0.0
    %364 = vmatpush1.msra.mxu0 0.0
    %365 = vmatprep.subr.mxu0 0.0
    %366 = vmatpush1.msra.mxu0 0.0
    %367 = vmatprep.subr.mxu0 0.0
    %368 = vmatpush1.msra.mxu0 0.0
    %369 = vmatprep.subr.mxu0 0.0
    %370 = vmatpush1.msra.mxu0 0.0
    %371 = vmatprep.subr.mxu0 0.0
    %372 = vmatpush1.msra.mxu0 0.0
    %373 = vmatprep.subr.mxu0 0.0
    %374 = vmatpush1.msra.mxu0 0.0
    %375 = vmatprep.subr.mxu0 0.0
    %376 = vmatpush1.msra.mxu0 0.0
    %377 = vmatprep.subr.mxu0 0.0
    %378 = vmatpush1.msra.mxu0 0.0
    %379 = vmatprep.subr.mxu0 0.0
    %380 = vmatpush1.msra.mxu0 0.0
    %381 = vmatprep.subr.mxu0 0.0
    %382 = vmatpush1.msra.mxu0 0.0
    %383 = vmatprep.subr.mxu0 0.0
    %384 = vmatpush1.msra.mxu0 0.0
    %385 = vmatprep.subr.mxu0 0.0
    %386 = vmatpush1.msra.mxu0 0.0
    %387 = vmatprep.subr.mxu0 0.0
    %388 = vmatpush1.msra.mxu0 0.0
    %389 = vmatprep.subr.mxu0 0.0
    %390 = vmatpush1.msra.mxu0 0.0
    %391 = vmatprep.subr.mxu0 0.0
    %392 = vmatpush1.msra.mxu0 0.0
    %393 = vmatprep.subr.mxu0 0.0
    %394 = vmatpush1.msra.mxu0 0.0
    %395 = vmatprep.subr.mxu0 0.0
    %396 = vmatpush1.msra.mxu0 0.0
    %397 = vmatprep.subr.mxu0 0.0
    %398 = vmatpush1.msra.mxu0 0.0
    %399 = vmatprep.subr.mxu0 0.0
    %400 = vmatpush1.msra.mxu0 0.0
    %401 = vmatprep.subr.mxu0 0.0
    %402 = vmatpush1.msra.mxu0 0.0
    %403 = vmatprep.subr.mxu0 0.0
    %404 = vmatpush1.msra.mxu0 0.0
    %405 = vmatprep.mubr.f32.mxu0 0.0
    %406 = vmatmul.mubr.f32.gmra.mrb[0].mxu0 %v339
    %v407 = vpop.f32.mrb[0].mxu0
    %v408 = vadd.f32 %v337, %v407
    %v409 = vpop.f32.mrb[0].mxu0
    %410 = vdwg.mxu0
    %v411 = vtanh.pop %v408
    %v412 = vxor.u32 %v408, 2147483648
    %v413 = vmul.f32 %v412, 1.442695
    %v414 = vpow.pop %v413
    %v415 = vadd.f32 %v414, 1.0
    %v416 = vrcp.pop %v415
    %v417 = vmul.f32 1.0, %v416
    %v418 = vadd.f32 %v417, 1e-06
    %s419 = sld [smem:[#allocation2]]
    %v420 = vstv %s419
    %v421 = vmul.f32 %v418, %v420
    %423 = vrot.lane.b32.xlu0 %v421, 124
    %v424 = vpop.permute.xlu0 %423
    %v426 = vadd.f32 %v411, %v424
    %v427 = vmax.f32 %v426, -1.0
    %v428 = vmin.f32 %v427, 1.0
    %v429 = vmul.f32 %v418, %v418
    %v430 = vmul.f32 %v429, 2.0
    %v431 = vrcp.pop %v430
    %v432 = vlaneseq
    %v433 = vshrl.u32 %v432, 7
    %v434 = vsub.s32 0, %v433
    %v435 = vrot.slane %v428, %v434
    %v436 = vsub.f32 %v435, %v411
    %v437 = vmul.f32 %v436, %v436
    %v438 = vsub.f32 0.0, %v437
    %440 = vrot.lane.b32.xlu0 %v431, 124
    %v441 = vpop.permute.xlu0 %440
    %v443 = vmul.f32 %v438, %v441
    %v444 = vlog2.pop %v418
    %v445 = vmul.f32 %v444, 0.6931472
    %447 = vrot.lane.b32.xlu0 %v445, 124
    %v448 = vpop.permute.xlu0 %447
    %v450 = vsub.f32 %v443, %v448
    %v451 = vsub.f32 %v450, 0.9189385
    %453 = vrot.lane.b32.xlu0 %v428, 8
    %v454 = vpop.permute.xlu0 %453
    %457 = vrot.lane.b32.xlu0 %v451, 12
    %v458 = vpop.permute.xlu0 %457
    %vm460 = vcmask 31744
    %v461 = vsel %vm460, %v411, %v418
    %vm462 = vcmask 64512
    %v463 = vsel %vm462, %v461, %v454
    %vm464 = vcmask 97280
    %v465 = vsel %vm464, %v463, %v458
    %vm466 = vcmask 123904
    %467 = vst.msk [vmem:[#allocation6] sm:$0x3] %vm466, %v465
    // Predicated region
    $region30: #{tpu_custom_call.1} parent=1 // pred_check
      _
    $region31: #{tpu_custom_call.1} parent=1 // pred_check_branch
      %469 = sbr.rel (0) target = $region33
    $region32: #{tpu_custom_call.1} parent=1 // pred_region
      %s471 = ssub.s32 32, 32
      %472 = vsyncadd [#allocation5], %s471
      %s474 = sshll.u32 [#allocation6], 4
      %s475 = int_to_ptr.vmem [resolvable:$true] %s474
      %477 = dma.vmem_to_hbm [thread:$0]  %s475, 32, %s6, [#allocation5]
    $region33: #{tpu_custom_call.1} parent=1 // pred_fallthru
      _
    // Predicated region
    $region34: #{tpu_custom_call.1} parent=1 // pred_check
      _
    $region35: #{tpu_custom_call.1} parent=1 // pred_check_branch
      %479 = sbr.rel (0) target = $region37
    $region36: #{tpu_custom_call.1} parent=1 // pred_region
      %s481 = ssub.s32 16, 16
      %482 = vsyncadd [#allocation8], %s481
      %s484 = sshll.u32 [#allocation7], 4
      %s485 = int_to_ptr.vmem [resolvable:$true] %s484
      %487 = dma.vmem_to_hbm [thread:$0]  %s485, 16, %s7, [#allocation8]
    $region37: #{tpu_custom_call.1} parent=1 // pred_fallthru
      _
    // Predicated region
    $region38: #{tpu_custom_call.1} parent=1 // pred_check
      _
    $region39: #{tpu_custom_call.1} parent=1 // pred_check_branch
      %489 = sbr.rel (0) target = $region41
    $region40: #{tpu_custom_call.1} parent=1 // pred_region
      %490 = dma.done [#allocation5], 32
    $region41: #{tpu_custom_call.1} parent=1 // pred_fallthru
      _
    // Predicated region
    $region42: #{tpu_custom_call.1} parent=1 // pred_check
      _
    $region43: #{tpu_custom_call.1} parent=1 // pred_check_branch
      %492 = sbr.rel (0) target = $region45
    $region44: #{tpu_custom_call.1} parent=1 // pred_region
      %493 = dma.done [#allocation8], 16
    $region45: #{tpu_custom_call.1} parent=1 // pred_fallthru
      _
    %494 = vsyncpa [#allocation4], 1
    %495 = vsyncpa [#allocation5], 1
    %496 = vsyncpa [#allocation8], 1

</llo_original>
